<compile_context>
chip_gen: v7x
topology: tpu7x:2x2x1
jax: 0.10.0
libtpu: 0.0.40
codegen_flags: <defaults>
</compile_context>

<pallas_src>
import jax
import jax.numpy as jnp
from jax.experimental import pallas as pl
from jax.experimental.pallas import tpu as pltpu

# ---- small synthetic sizes implied by the forward pass --------------------
BATCH = 2            # video clips
NUM_SEGMENTS = 4     # T frames per clip
NUM_CHANNELS = 3     # RGB
H = W = 16
POSE_IN = 24         # pose-model input feature size (stand-in)
D_RGB = 48           # base_model feature dim (stand-in for 1024 / 2048)
D_POSE = 16          # pose_model feature dim
FEAT = D_RGB + D_POSE            # 64, divisible by attention_heads = 4
NUM_CLASS = 8
BN_EPS = 1e-5

_BIAS_ROWS = 8       # packed bias tile: one (8,128) VMEM tile, rows 0..5 used
_BIAS_COLS = 128


def _make_kernel(batch, num_segments):
    n = batch * num_segments

    def _fused_kernel(rgb_ref, pose_ref, w_rgb_ref, w_pose_ref,
                      wv_rgb_ref, wv_pose_ref, wo_ref,
                      w1_ref, w2_ref, wfc_ref, bias_ref, out_ref):
        f32 = jnp.float32

        # ---- stand-in backbones ------------------------------------------------
        # TODO(synk): real BNInception / ResNet-GSF and PoseModelFast backbones are
        # external modules and not translatable here; replaced by deterministic
        # GAP+linear / linear stand-ins producing the same feature shapes.  The
        # RGB global-average-pool is folded into the linear weight at param-prep
        # time, so the kernel sees a lane-dense (N, C*H*W) input and one matmul.
        rgb_feat = (jnp.dot(rgb_ref[...], w_rgb_ref[...], preferred_element_type=f32)
                    + bias_ref[0:1, 0:D_RGB])                             # (N, D_RGB)
        pose_feat = (jnp.dot(pose_ref[...], w_pose_ref[...], preferred_element_type=f32)
                     + bias_ref[1:2, 0:D_POSE])                           # (N, D_POSE)

        # ---- F.normalize(p=2, dim=1): x / max(||x||, 1e-12) via one rsqrt -------
        def l2n(x):
            nrm2 = jnp.sum(x * x, axis=1, keepdims=True)
            return x * jax.lax.rsqrt(jnp.maximum(nrm2, 1e-24))

        rgb_n = l2n(rgb_feat)
        pose_n = l2n(pose_feat)

        # ---- MultiheadAttention over a length-1 sequence ------------------------
        # softmax over a single key == 1.0, so attention == out_proj(in_proj_V(x));
        # the concat([rgb_n, pose_n]) is folded into split V weights (exact), and
        # the V bias is folded through out_proj into bias row 2 at prep time.
        # Dropout (attention + refinement) is an eval-mode identity.
        v = (jnp.dot(rgb_n, wv_rgb_ref[...], preferred_element_type=f32)
             + jnp.dot(pose_n, wv_pose_ref[...], preferred_element_type=f32))
        attn = (jnp.dot(v, wo_ref[...], preferred_element_type=f32)
                + bias_ref[2:3, 0:FEAT])                                  # (N, FEAT)

        # ---- feature refinement: Linear (+ folded eval-mode BN) -> ReLU, twice ---
        h1 = jnp.maximum(jnp.dot(attn, w1_ref[...], preferred_element_type=f32)
                         + bias_ref[3:4, 0:FEAT // 2], 0.0)
        h2 = jnp.maximum(jnp.dot(h1, w2_ref[...], preferred_element_type=f32)
                         + bias_ref[4:5, 0:FEAT // 4], 0.0)

        # ---- classifier ----------------------------------------------------------
        logits = (jnp.dot(h2, wfc_ref[...], preferred_element_type=f32)
                  + bias_ref[5:6, 0:NUM_CLASS])                           # (N, C)

        # ---- 'avg' consensus over T on the VPU (no extra input, no MXU) ----------
        row_id = jax.lax.broadcasted_iota(jnp.int32, (n, NUM_CLASS), 0)
        inv_t = 1.0 / num_segments
        for b in range(batch):                       # static unroll, tiny B
            lo, hi = b * num_segments, (b + 1) * num_segments
            seg = jnp.where((row_id >= lo) & (row_id < hi), logits, 0.0)
            out_ref[b:b + 1, :] = jnp.sum(seg, axis=0, keepdims=True) * inv_t

    return _fused_kernel


def init_params(key):
    """Deterministic parameter init (PyTorch-style (out, in) weight storage)."""
    ks = jax.random.split(key, 9)
    f32 = jnp.float32

    def nrm(k, shape, std):
        return (std * jax.random.normal(k, shape, f32)).astype(f32)

    return {
        # stand-in backbones
        "w_rgb": nrm(ks[0], (D_RGB, NUM_CHANNELS), 0.1),
        "b_rgb": jnp.zeros((1, D_RGB), f32),
        "w_pose": nrm(ks[1], (D_POSE, POSE_IN), 0.1),
        "b_pose": jnp.zeros((1, D_POSE), f32),
        # MultiheadAttention (V slice of in_proj + out_proj are the only ones
        # that affect the output for seq_len == 1)
        "wv": nrm(ks[2], (FEAT, FEAT), 0.05),
        "bv": jnp.zeros((1, FEAT), f32),
        "wo": nrm(ks[3], (FEAT, FEAT), 0.05),
        "bo": jnp.zeros((1, FEAT), f32),
        # feature_refinement_layer
        "w1": nrm(ks[4], (FEAT // 2, FEAT), 0.05),
        "b1": nrm(ks[5], (1, FEAT // 2), 0.01),
        "g1": jnp.ones((1, FEAT // 2), f32),
        "be1": jnp.zeros((1, FEAT // 2), f32),
        "m1": jnp.zeros((1, FEAT // 2), f32),
        "v1": jnp.ones((1, FEAT // 2), f32),
        "w2": nrm(ks[6], (FEAT // 4, FEAT // 2), 0.05),
        "b2": nrm(ks[7], (1, FEAT // 4), 0.01),
        "g2": jnp.ones((1, FEAT // 4), f32),
        "be2": jnp.zeros((1, FEAT // 4), f32),
        "m2": jnp.zeros((1, FEAT // 4), f32),
        "v2": jnp.ones((1, FEAT // 4), f32),
        # new_fc: normal_(weight, 0, 0.001); constant_(bias, 0)
        "wfc": nrm(ks[8], (NUM_CLASS, FEAT // 4), 0.001),
        "bfc": jnp.zeros((1, NUM_CLASS), f32),
    }


def prepare_kernel_params(p):
    """One-time param prep (hoisted out of the hot path):
       * transpose weights to (in, out),
       * fold the RGB global-average-pool into the RGB linear weight,
       * fold eval-mode BatchNorm into the refinement linears,
       * fold the V-projection bias through out_proj,
       * pack every bias row vector into one (8, 128) VMEM tile."""
    f32 = jnp.float32
    hw = H * W

    w_rgb_gap = jnp.repeat(p["w_rgb"].T.astype(f32) / hw, hw, axis=0)   # (C*H*W, D_RGB)
    w_pose_t = p["w_pose"].T.astype(f32)                                # (POSE_IN, D_POSE)

    wv_rgb_t = p["wv"][:, :D_RGB].T.astype(f32)                         # (D_RGB, FEAT)
    wv_pose_t = p["wv"][:, D_RGB:].T.astype(f32)                        # (D_POSE, FEAT)
    wo_t = p["wo"].T.astype(f32)                                        # (FEAT, FEAT)
    b_attn = p["bv"] @ wo_t + p["bo"]                                   # (1, FEAT)

    s1 = p["g1"] / jnp.sqrt(p["v1"] + BN_EPS)                           # (1, FEAT//2)
    w1_t = p["w1"].T.astype(f32) * s1                                   # (FEAT, FEAT//2)
    b1_f = (p["b1"] - p["m1"]) * s1 + p["be1"]
    s2 = p["g2"] / jnp.sqrt(p["v2"] + BN_EPS)
    w2_t = p["w2"].T.astype(f32) * s2                                   # (FEAT//2, FEAT//4)
    b2_f = (p["b2"] - p["m2"]) * s2 + p["be2"]

    wfc_t = p["wfc"].T.astype(f32)                                      # (FEAT//4, NUM_CLASS)

    bias = jnp.zeros((_BIAS_ROWS, _BIAS_COLS), f32)
    bias = bias.at[0, :D_RGB].set(p["b_rgb"][0])
    bias = bias.at[1, :D_POSE].set(p["b_pose"][0])
    bias = bias.at[2, :FEAT].set(b_attn[0])
    bias = bias.at[3, :FEAT // 2].set(b1_f[0])
    bias = bias.at[4, :FEAT // 4].set(b2_f[0])
    bias = bias.at[5, :NUM_CLASS].set(p["bfc"][0])

    return (w_rgb_gap, w_pose_t, wv_rgb_t, wv_pose_t, wo_t,
            w1_t, w2_t, wfc_t, bias)


def _forward(input_rgb, input_pose, kp):
    """input_rgb: (B, T, C, H, W); input_pose: (B, T, POSE_IN)."""
    batch, num_segments = input_rgb.shape[0], input_rgb.shape[1]
    n = batch * num_segments

    # lane-dense layouts: channel*spatial flattened onto the lane (last) axis
    rgb_2d = input_rgb.reshape(n, -1).astype(jnp.float32)     # (N, C*H*W)
    pose_2d = input_pose.reshape(n, -1).astype(jnp.float32)   # (N, POSE_IN)

    args = (rgb_2d, pose_2d) + tuple(kp)
    vmem = pltpu.MemorySpace.VMEM
    out = pl.pallas_call(
        _make_kernel(batch, num_segments),
        out_shape=jax.ShapeDtypeStruct((batch, NUM_CLASS), jnp.float32),
        in_specs=[pl.BlockSpec(memory_space=vmem)] * len(args),
        out_specs=pl.BlockSpec(memory_space=vmem),
        # TODO(synk): at real backbone sizes (D_RGB=1024/2048, 224x224 frames,
        # large B*T) add a grid over N with dimension_semantics=("parallel",)
        # (2nd v7x TensorCore), cast matmul operands to bf16 with f32
        # accumulation, and size N-tiles for v7x's 64 MiB VMEM.
    )(*args)

    # ConsensusModule('avg') keeps the segment dim: (B, 1, num_class)
    return out[:, None, :]


video_late_fusion_attention = jax.jit(_forward)


def reference_forward(input_rgb, input_pose, p):
    """Pure-jnp eval-mode reference using the raw (unfolded) parameters."""
    batch, num_segments, c, h, w = input_rgb.shape
    n = batch * num_segments
    rgb = input_rgb.reshape(n, c, h * w).astype(jnp.float32)
    gap = jnp.mean(rgb, axis=-1)
    rgb_feat = gap @ p["w_rgb"].T + p["b_rgb"]
    pose_feat = input_pose.reshape(n, -1).astype(jnp.float32) @ p["w_pose"].T + p["b_pose"]

    def l2n(x):
        return x / jnp.maximum(jnp.sqrt(jnp.sum(x * x, axis=1, keepdims=True)), 1e-12)

    comb = jnp.concatenate([l2n(rgb_feat), l2n(pose_feat)], axis=1)
    v = comb @ p["wv"].T + p["bv"]
    attn = v @ p["wo"].T + p["bo"]

    def bn(x, g, be, m, var):
        return (x - m) / jnp.sqrt(var + BN_EPS) * g + be

    h1 = jnp.maximum(bn(attn @ p["w1"].T + p["b1"], p["g1"], p["be1"], p["m1"], p["v1"]), 0.0)
    h2 = jnp.maximum(bn(h1 @ p["w2"].T + p["b2"], p["g2"], p["be2"], p["m2"], p["v2"]), 0.0)
    logits = h2 @ p["wfc"].T + p["bfc"]
    return jnp.mean(logits.reshape(batch, num_segments, -1), axis=1, keepdims=True)


if __name__ == "__main__":
    key = jax.random.PRNGKey(0)
    k_rgb, k_pose, k_par = jax.random.split(key, 3)
    input_rgb = jax.random.normal(k_rgb, (BATCH, NUM_SEGMENTS, NUM_CHANNELS, H, W), jnp.float32)
    input_pose = jax.random.normal(k_pose, (BATCH, NUM_SEGMENTS, POSE_IN), jnp.float32)
    params = init_params(k_par)

    # one-time prep (BN fold, GAP fold, transposes, bias packing) — not per call
    kernel_params = prepare_kernel_params(params)

    out = video_late_fusion_attention(input_rgb, input_pose, kernel_params)
    out = jax.block_until_ready(out)
    assert out.shape == (BATCH, 1, NUM_CLASS), out.shape
    assert bool(jnp.all(jnp.isfinite(out)))

    ref = reference_forward(input_rgb, input_pose, params)
    max_err = float(jnp.max(jnp.abs(out - ref)))
    assert bool(jnp.allclose(out, ref, rtol=1e-3, atol=1e-5)), max_err

    print("KERNEL_OK")
</pallas_src>

<mosaic_0001>
module attributes {stable_mosaic.version = 11 : i64} {
  func.func @_fused_kernel(%arg0: memref<8x768xf32, #tpu.memory_space<vmem>>, %arg1: memref<8x24xf32, #tpu.memory_space<vmem>>, %arg2: memref<768x48xf32, #tpu.memory_space<vmem>>, %arg3: memref<24x16xf32, #tpu.memory_space<vmem>>, %arg4: memref<48x64xf32, #tpu.memory_space<vmem>>, %arg5: memref<16x64xf32, #tpu.memory_space<vmem>>, %arg6: memref<64x64xf32, #tpu.memory_space<vmem>>, %arg7: memref<64x32xf32, #tpu.memory_space<vmem>>, %arg8: memref<32x16xf32, #tpu.memory_space<vmem>>, %arg9: memref<16x8xf32, #tpu.memory_space<vmem>>, %arg10: memref<8x128xf32, #tpu.memory_space<vmem>>, %arg11: memref<2x8xf32, #tpu.memory_space<vmem>>) attributes {dimension_semantics = [], scalar_prefetch = 0 : i64, scratch_operands = 0 : i64, tpu.core_type = #tpu.core_type<tc>} {
    %c0 = arith.constant 0 : index
    %c0_0 = arith.constant 0 : index
    %0 = vector.load %arg0[%c0, %c0_0] : memref<8x768xf32, #tpu.memory_space<vmem>>, vector<8x768xf32>
    %c0_1 = arith.constant 0 : index
    %c0_2 = arith.constant 0 : index
    %1 = vector.load %arg2[%c0_1, %c0_2] : memref<768x48xf32, #tpu.memory_space<vmem>>, vector<768x48xf32>
    %cst = arith.constant dense<0.000000e+00> : vector<8x48xf32>
    %2 = tpu.matmul %0, %1, %cst {dimension_numbers = #tpu.dot_dimension_numbers<[1], [0], [0], [1], [0, 0, 1, 1], [], []>} : vector<8x768xf32>, vector<768x48xf32>, vector<8x48xf32> -> vector<8x48xf32>
    %c0_3 = arith.constant 0 : index
    %c0_4 = arith.constant 0 : index
    %3 = vector.load %arg10[%c0_3, %c0_4] : memref<8x128xf32, #tpu.memory_space<vmem>>, vector<1x48xf32>
    %4 = vector.broadcast %3 : vector<1x48xf32> to vector<8x48xf32>
    %5 = arith.addf %2, %4 : vector<8x48xf32>
    %c0_5 = arith.constant 0 : index
    %c0_6 = arith.constant 0 : index
    %6 = vector.load %arg1[%c0_5, %c0_6] : memref<8x24xf32, #tpu.memory_space<vmem>>, vector<8x24xf32>
    %c0_7 = arith.constant 0 : index
    %c0_8 = arith.constant 0 : index
    %7 = vector.load %arg3[%c0_7, %c0_8] : memref<24x16xf32, #tpu.memory_space<vmem>>, vector<24x16xf32>
    %cst_9 = arith.constant dense<0.000000e+00> : vector<8x16xf32>
    %8 = tpu.matmul %6, %7, %cst_9 {dimension_numbers = #tpu.dot_dimension_numbers<[1], [0], [0], [1], [0, 0, 1, 1], [], []>} : vector<8x24xf32>, vector<24x16xf32>, vector<8x16xf32> -> vector<8x16xf32>
    %c1 = arith.constant 1 : index
    %c0_10 = arith.constant 0 : index
    %9 = vector.load %arg10[%c1, %c0_10] : memref<8x128xf32, #tpu.memory_space<vmem>>, vector<1x16xf32>
    %10 = vector.broadcast %9 : vector<1x16xf32> to vector<8x16xf32>
    %11 = arith.addf %8, %10 : vector<8x16xf32>
    %12 = arith.mulf %5, %5 : vector<8x48xf32>
    %cst_11 = arith.constant dense<0.000000e+00> : vector<8xf32>
    %13 = vector.multi_reduction <add>, %12, %cst_11 [1] : vector<8x48xf32> to vector<8xf32>
    %14 = vector.shape_cast %13 : vector<8xf32> to vector<8x1xf32>
    %cst_12 = arith.constant 1.000000e-24 : f32
    %15 = vector.broadcast %cst_12 : f32 to vector<8x1xf32>
    %16 = arith.maximumf %14, %15 : vector<8x1xf32>
    %17 = math.rsqrt %16 : vector<8x1xf32>
    %18 = vector.broadcast %17 : vector<8x1xf32> to vector<8x48xf32>
    %19 = arith.mulf %5, %18 : vector<8x48xf32>
    %20 = arith.mulf %11, %11 : vector<8x16xf32>
    %cst_13 = arith.constant dense<0.000000e+00> : vector<8xf32>
    %21 = vector.multi_reduction <add>, %20, %cst_13 [1] : vector<8x16xf32> to vector<8xf32>
    %22 = vector.shape_cast %21 : vector<8xf32> to vector<8x1xf32>
    %cst_14 = arith.constant 1.000000e-24 : f32
    %23 = vector.broadcast %cst_14 : f32 to vector<8x1xf32>
    %24 = arith.maximumf %22, %23 : vector<8x1xf32>
    %25 = math.rsqrt %24 : vector<8x1xf32>
    %26 = vector.broadcast %25 : vector<8x1xf32> to vector<8x16xf32>
    %27 = arith.mulf %11, %26 : vector<8x16xf32>
    %c0_15 = arith.constant 0 : index
    %c0_16 = arith.constant 0 : index
    %28 = vector.load %arg4[%c0_15, %c0_16] : memref<48x64xf32, #tpu.memory_space<vmem>>, vector<48x64xf32>
    %cst_17 = arith.constant dense<0.000000e+00> : vector<8x64xf32>
    %29 = tpu.matmul %19, %28, %cst_17 {dimension_numbers = #tpu.dot_dimension_numbers<[1], [0], [0], [1], [0, 0, 1, 1], [], []>} : vector<8x48xf32>, vector<48x64xf32>, vector<8x64xf32> -> vector<8x64xf32>
    %c0_18 = arith.constant 0 : index
    %c0_19 = arith.constant 0 : index
    %30 = vector.load %arg5[%c0_18, %c0_19] : memref<16x64xf32, #tpu.memory_space<vmem>>, vector<16x64xf32>
    %cst_20 = arith.constant dense<0.000000e+00> : vector<8x64xf32>
    %31 = tpu.matmul %27, %30, %cst_20 {dimension_numbers = #tpu.dot_dimension_numbers<[1], [0], [0], [1], [0, 0, 1, 1], [], []>} : vector<8x16xf32>, vector<16x64xf32>, vector<8x64xf32> -> vector<8x64xf32>
    %32 = arith.addf %29, %31 : vector<8x64xf32>
    %c0_21 = arith.constant 0 : index
    %c0_22 = arith.constant 0 : index
    %33 = vector.load %arg6[%c0_21, %c0_22] : memref<64x64xf32, #tpu.memory_space<vmem>>, vector<64x64xf32>
    %cst_23 = arith.constant dense<0.000000e+00> : vector<8x64xf32>
    %34 = tpu.matmul %32, %33, %cst_23 {dimension_numbers = #tpu.dot_dimension_numbers<[1], [0], [0], [1], [0, 0, 1, 1], [], []>} : vector<8x64xf32>, vector<64x64xf32>, vector<8x64xf32> -> vector<8x64xf32>
    %c2 = arith.constant 2 : index
    %c0_24 = arith.constant 0 : index
    %35 = vector.load %arg10[%c2, %c0_24] : memref<8x128xf32, #tpu.memory_space<vmem>>, vector<1x64xf32>
    %36 = vector.broadcast %35 : vector<1x64xf32> to vector<8x64xf32>
    %37 = arith.addf %34, %36 : vector<8x64xf32>
    %c0_25 = arith.constant 0 : index
    %c0_26 = arith.constant 0 : index
    %38 = vector.load %arg7[%c0_25, %c0_26] : memref<64x32xf32, #tpu.memory_space<vmem>>, vector<64x32xf32>
    %cst_27 = arith.constant dense<0.000000e+00> : vector<8x32xf32>
    %39 = tpu.matmul %37, %38, %cst_27 {dimension_numbers = #tpu.dot_dimension_numbers<[1], [0], [0], [1], [0, 0, 1, 1], [], []>} : vector<8x64xf32>, vector<64x32xf32>, vector<8x32xf32> -> vector<8x32xf32>
    %c3 = arith.constant 3 : index
    %c0_28 = arith.constant 0 : index
    %40 = vector.load %arg10[%c3, %c0_28] : memref<8x128xf32, #tpu.memory_space<vmem>>, vector<1x32xf32>
    %41 = vector.broadcast %40 : vector<1x32xf32> to vector<8x32xf32>
    %42 = arith.addf %39, %41 : vector<8x32xf32>
    %cst_29 = arith.constant 0.000000e+00 : f32
    %43 = vector.broadcast %cst_29 : f32 to vector<8x32xf32>
    %44 = arith.maximumf %42, %43 : vector<8x32xf32>
    %c0_30 = arith.constant 0 : index
    %c0_31 = arith.constant 0 : index
    %45 = vector.load %arg8[%c0_30, %c0_31] : memref<32x16xf32, #tpu.memory_space<vmem>>, vector<32x16xf32>
    %cst_32 = arith.constant dense<0.000000e+00> : vector<8x16xf32>
    %46 = tpu.matmul %44, %45, %cst_32 {dimension_numbers = #tpu.dot_dimension_numbers<[1], [0], [0], [1], [0, 0, 1, 1], [], []>} : vector<8x32xf32>, vector<32x16xf32>, vector<8x16xf32> -> vector<8x16xf32>
    %c4 = arith.constant 4 : index
    %c0_33 = arith.constant 0 : index
    %47 = vector.load %arg10[%c4, %c0_33] : memref<8x128xf32, #tpu.memory_space<vmem>>, vector<1x16xf32>
    %48 = vector.broadcast %47 : vector<1x16xf32> to vector<8x16xf32>
    %49 = arith.addf %46, %48 : vector<8x16xf32>
    %cst_34 = arith.constant 0.000000e+00 : f32
    %50 = vector.broadcast %cst_34 : f32 to vector<8x16xf32>
    %51 = arith.maximumf %49, %50 : vector<8x16xf32>
    %c0_35 = arith.constant 0 : index
    %c0_36 = arith.constant 0 : index
    %52 = vector.load %arg9[%c0_35, %c0_36] : memref<16x8xf32, #tpu.memory_space<vmem>>, vector<16x8xf32>
    %cst_37 = arith.constant dense<0.000000e+00> : vector<8x8xf32>
    %53 = tpu.matmul %51, %52, %cst_37 {dimension_numbers = #tpu.dot_dimension_numbers<[1], [0], [0], [1], [0, 0, 1, 1], [], []>} : vector<8x16xf32>, vector<16x8xf32>, vector<8x8xf32> -> vector<8x8xf32>
    %c5 = arith.constant 5 : index
    %c0_38 = arith.constant 0 : index
    %54 = vector.load %arg10[%c5, %c0_38] : memref<8x128xf32, #tpu.memory_space<vmem>>, vector<1x8xf32>
    %55 = vector.broadcast %54 : vector<1x8xf32> to vector<8x8xf32>
    %56 = arith.addf %53, %55 : vector<8x8xf32>
    %57 = tpu.iota {dimensions = array<i32: 0>} : vector<8x8xi32>
    %c0_i32 = arith.constant 0 : i32
    %58 = vector.broadcast %c0_i32 : i32 to vector<8x8xi32>
    %59 = arith.cmpi sge, %57, %58 : vector<8x8xi32>
    %c4_i32 = arith.constant 4 : i32
    %60 = vector.broadcast %c4_i32 : i32 to vector<8x8xi32>
    %61 = arith.cmpi slt, %57, %60 : vector<8x8xi32>
    %62 = arith.andi %59, %61 : vector<8x8xi1>
    %cst_39 = arith.constant 0.000000e+00 : f32
    %63 = vector.broadcast %cst_39 : f32 to vector<8x8xf32>
    %64 = arith.select %62, %56, %63 : vector<8x8xi1>, vector<8x8xf32>
    %cst_40 = arith.constant dense<0.000000e+00> : vector<8xf32>
    %65 = vector.multi_reduction <add>, %64, %cst_40 [0] : vector<8x8xf32> to vector<8xf32>
    %66 = vector.shape_cast %65 : vector<8xf32> to vector<1x8xf32>
    %cst_41 = arith.constant 2.500000e-01 : f32
    %67 = vector.broadcast %cst_41 : f32 to vector<1x8xf32>
    %68 = arith.mulf %66, %67 : vector<1x8xf32>
    %c0_42 = arith.constant 0 : index
    %c0_43 = arith.constant 0 : index
    %69 = vector.load %arg11[%c0_42, %c0_43] : memref<2x8xf32, #tpu.memory_space<vmem>>, vector<1x8xf32>
    tpu.vector_store %arg11[%c0_42, %c0_43], %68 {strides = array<i32>} : memref<2x8xf32, #tpu.memory_space<vmem>>, vector<1x8xf32>,
    %c4_i32_44 = arith.constant 4 : i32
    %70 = vector.broadcast %c4_i32_44 : i32 to vector<8x8xi32>
    %71 = arith.cmpi sge, %57, %70 : vector<8x8xi32>
    %c8_i32 = arith.constant 8 : i32
    %72 = vector.broadcast %c8_i32 : i32 to vector<8x8xi32>
    %73 = arith.cmpi slt, %57, %72 : vector<8x8xi32>
    %74 = arith.andi %71, %73 : vector<8x8xi1>
    %cst_45 = arith.constant 0.000000e+00 : f32
    %75 = vector.broadcast %cst_45 : f32 to vector<8x8xf32>
    %76 = arith.select %74, %56, %75 : vector<8x8xi1>, vector<8x8xf32>
    %cst_46 = arith.constant dense<0.000000e+00> : vector<8xf32>
    %77 = vector.multi_reduction <add>, %76, %cst_46 [0] : vector<8x8xf32> to vector<8xf32>
    %78 = vector.shape_cast %77 : vector<8xf32> to vector<1x8xf32>
    %cst_47 = arith.constant 2.500000e-01 : f32
    %79 = vector.broadcast %cst_47 : f32 to vector<1x8xf32>
    %80 = arith.mulf %78, %79 : vector<1x8xf32>
    %c1_48 = arith.constant 1 : index
    %c0_49 = arith.constant 0 : index
    %81 = vector.load %arg11[%c1_48, %c0_49] : memref<2x8xf32, #tpu.memory_space<vmem>>, vector<1x8xf32>
    tpu.vector_store %arg11[%c1_48, %c0_49], %80 {strides = array<i32>} : memref<2x8xf32, #tpu.memory_space<vmem>>, vector<1x8xf32>,
    return
  }
}

</mosaic_0001>

<llo_original>
// kernel: _forward.1
$region0: #{_forward.1}
  #allocation0 [shape = 'u32[]', space=smem, size = 0x4, offset = 0x4, fixed_abs, tag = 'smem constant byte address 0x4 - core index']
  #allocation1 [shape = 'u32[144,128]{1,0:T(1,128)}', space=vmem, size = 0x12000, scoped, tag = 'internal scratch']
  %s0 = inlined_call_operand.vmem [shape: f32[8,768], index: 0, kind: input, shape index: {}]
  %s1 = inlined_call_operand.vmem [shape: f32[8,24], index: 1, kind: input, shape index: {}]
  %s2 = inlined_call_operand.vmem [shape: f32[768,48], index: 2, kind: input, shape index: {}]
  %s3 = inlined_call_operand.vmem [shape: f32[24,16], index: 3, kind: input, shape index: {}]
  %s4 = inlined_call_operand.vmem [shape: f32[48,64], index: 4, kind: input, shape index: {}]
  %s5 = inlined_call_operand.vmem [shape: f32[16,64], index: 5, kind: input, shape index: {}]
  %s6 = inlined_call_operand.vmem [shape: f32[64,64], index: 6, kind: input, shape index: {}]
  %s7 = inlined_call_operand.vmem [shape: f32[64,32], index: 7, kind: input, shape index: {}]
  %s8 = inlined_call_operand.vmem [shape: f32[32,16], index: 8, kind: input, shape index: {}]
  %s9 = inlined_call_operand.vmem [shape: f32[16,8], index: 9, kind: input, shape index: {}]
  %s10 = inlined_call_operand.vmem [shape: f32[8,128], index: 10, kind: input, shape index: {}]
  %s11 = inlined_call_operand.hbm [shape: f32[2,8], index: 11, kind: output, shape index: {}]
  %s12 = sld [smem:[#allocation0]]
  $region54: #{_forward.1} parent=0
    _
  %s14 = ssub.s32 1, %s12
  %s15 = scalar_select 0, %s14, %s12
  $region1: #{_forward.1} parent=0
    #allocation2 [shape = 'u8[1024]{0}', space=vmem, size = 0x400, scoped, tag = 'output window, operand 0, single buffered']
    #allocation3 [shape = 's32[1]{0}', space=sflag, size = 0x4, scoped, tag = 'scoped memory for _forward.1']
    %16 = vsyncpa [#allocation3], 0
    // Predicated region
    $region2: #{_forward.1} parent=1 // pred_check
      _
    $region3: #{_forward.1} parent=1 // pred_check_branch
      %18 = sbr.rel (0) target = $region5
    $region4: #{_forward.1} parent=1 // pred_region
      _
    $region5: #{_forward.1} parent=1 // pred_fallthru
      _
    // Predicated region
    $region6: #{_forward.1} parent=1 // pred_check
      _
    $region7: #{_forward.1} parent=1 // pred_check_branch
      %20 = sbr.rel (0) target = $region9
    $region8: #{_forward.1} parent=1 // pred_region
      _
    $region9: #{_forward.1} parent=1 // pred_fallthru
      _
    // Predicated region
    $region10: #{_forward.1} parent=1 // pred_check
      _
    $region11: #{_forward.1} parent=1 // pred_check_branch
      %22 = sbr.rel (0) target = $region13
    $region12: #{_forward.1} parent=1 // pred_region
      _
    $region13: #{_forward.1} parent=1 // pred_fallthru
      _
    // Predicated region
    $region14: #{_forward.1} parent=1 // pred_check
      _
    $region15: #{_forward.1} parent=1 // pred_check_branch
      %24 = sbr.rel (0) target = $region17
    $region16: #{_forward.1} parent=1 // pred_region
      _
    $region17: #{_forward.1} parent=1 // pred_fallthru
      _
    // Predicated region
    $region18: #{_forward.1} parent=1 // pred_check
      _
    $region19: #{_forward.1} parent=1 // pred_check_branch
      %26 = sbr.rel (0) target = $region21
    $region20: #{_forward.1} parent=1 // pred_region
      _
    $region21: #{_forward.1} parent=1 // pred_fallthru
      _
    // Predicated region
    $region22: #{_forward.1} parent=1 // pred_check
      _
    $region23: #{_forward.1} parent=1 // pred_check_branch
      %28 = sbr.rel (0) target = $region25
    $region24: #{_forward.1} parent=1 // pred_region
      _
    $region25: #{_forward.1} parent=1 // pred_fallthru
      _
    // Predicated region
    $region26: #{_forward.1} parent=1 // pred_check
      _
    $region27: #{_forward.1} parent=1 // pred_check_branch
      %30 = sbr.rel (0) target = $region29
    $region28: #{_forward.1} parent=1 // pred_region
      _
    $region29: #{_forward.1} parent=1 // pred_fallthru
      _
    // Predicated region
    $region30: #{_forward.1} parent=1 // pred_check
      _
    $region31: #{_forward.1} parent=1 // pred_check_branch
      %32 = sbr.rel (0) target = $region33
    $region32: #{_forward.1} parent=1 // pred_region
      _
    $region33: #{_forward.1} parent=1 // pred_fallthru
      _
    // Predicated region
    $region34: #{_forward.1} parent=1 // pred_check
      _
    $region35: #{_forward.1} parent=1 // pred_check_branch
      %34 = sbr.rel (0) target = $region37
    $region36: #{_forward.1} parent=1 // pred_region
      _
    $region37: #{_forward.1} parent=1 // pred_fallthru
      _
    // Predicated region
    $region38: #{_forward.1} parent=1 // pred_check
      _
    $region39: #{_forward.1} parent=1 // pred_check_branch
      %36 = sbr.rel (0) target = $region41
    $region40: #{_forward.1} parent=1 // pred_region
      _
    $region41: #{_forward.1} parent=1 // pred_fallthru
      _
    // Predicated region
    $region42: #{_forward.1} parent=1 // pred_check
      _
    $region43: #{_forward.1} parent=1 // pred_check_branch
      %38 = sbr.rel (0) target = $region45
    $region44: #{_forward.1} parent=1 // pred_region
      _
    $region45: #{_forward.1} parent=1 // pred_fallthru
      _
    %v39 = vld [vmem:[%s0] sm:$0xff]
    %v40 = vld [vmem:[%s0 + $0x8] sm:$0xff]
    %v41 = vld [vmem:[%s0 + $0x10] sm:$0xff]
    %v42 = vld [vmem:[%s0 + $0x18] sm:$0xff]
    %v43 = vld [vmem:[%s0 + $0x20] sm:$0xff]
    %v44 = vld [vmem:[%s0 + $0x28] sm:$0xff]
    %v45 = vld [vmem:[%s2] sm:$0xff]
    %v46 = vld [vmem:[%s2 + $0x8] sm:$0xff]
    %v47 = vld [vmem:[%s2 + $0x10] sm:$0xff]
    %v48 = vld [vmem:[%s2 + $0x18] sm:$0xff]
    %v49 = vld [vmem:[%s2 + $0x20] sm:$0xff]
    %v50 = vld [vmem:[%s2 + $0x28] sm:$0xff]
    %v51 = vld [vmem:[%s2 + $0x30] sm:$0xff]
    %v52 = vld [vmem:[%s2 + $0x38] sm:$0xff]
    %v53 = vld [vmem:[%s2 + $0x40] sm:$0xff]
    %v54 = vld [vmem:[%s2 + $0x48] sm:$0xff]
    %v55 = vld [vmem:[%s2 + $0x50] sm:$0xff]
    %v56 = vld [vmem:[%s2 + $0x58] sm:$0xff]
    %v57 = vld [vmem:[%s2 + $0x60] sm:$0xff]
    %v58 = vld [vmem:[%s2 + $0x68] sm:$0xff]
    %v59 = vld [vmem:[%s2 + $0x70] sm:$0xff]
    %v60 = vld [vmem:[%s2 + $0x78] sm:$0xff]
    %v61 = vld [vmem:[%s2 + $0x80] sm:$0xff]
    %v62 = vld [vmem:[%s2 + $0x88] sm:$0xff]
    %v63 = vld [vmem:[%s2 + $0x90] sm:$0xff]
    %v64 = vld [vmem:[%s2 + $0x98] sm:$0xff]
    %v65 = vld [vmem:[%s2 + $0xa0] sm:$0xff]
    %v66 = vld [vmem:[%s2 + $0xa8] sm:$0xff]
    %v67 = vld [vmem:[%s2 + $0xb0] sm:$0xff]
    %v68 = vld [vmem:[%s2 + $0xb8] sm:$0xff]
    %v69 = vld [vmem:[%s2 + $0xc0] sm:$0xff]
    %v70 = vld [vmem:[%s2 + $0xc8] sm:$0xff]
    %v71 = vld [vmem:[%s2 + $0xd0] sm:$0xff]
    %v72 = vld [vmem:[%s2 + $0xd8] sm:$0xff]
    %v73 = vld [vmem:[%s2 + $0xe0] sm:$0xff]
    %v74 = vld [vmem:[%s2 + $0xe8] sm:$0xff]
    %v75 = vld [vmem:[%s2 + $0xf0] sm:$0xff]
    %v76 = vld [vmem:[%s2 + $0xf8] sm:$0xff]
    %v77 = vld [vmem:[%s2 + $0x100] sm:$0xff]
    %v78 = vld [vmem:[%s2 + $0x108] sm:$0xff]
    %v79 = vld [vmem:[%s2 + $0x110] sm:$0xff]
    %v80 = vld [vmem:[%s2 + $0x118] sm:$0xff]
    %v81 = vld [vmem:[%s2 + $0x120] sm:$0xff]
    %v82 = vld [vmem:[%s2 + $0x128] sm:$0xff]
    %v83 = vld [vmem:[%s2 + $0x130] sm:$0xff]
    %v84 = vld [vmem:[%s2 + $0x138] sm:$0xff]
    %v85 = vld [vmem:[%s2 + $0x140] sm:$0xff]
    %v86 = vld [vmem:[%s2 + $0x148] sm:$0xff]
    %v87 = vld [vmem:[%s2 + $0x150] sm:$0xff]
    %v88 = vld [vmem:[%s2 + $0x158] sm:$0xff]
    %v89 = vld [vmem:[%s2 + $0x160] sm:$0xff]
    %v90 = vld [vmem:[%s2 + $0x168] sm:$0xff]
    %v91 = vld [vmem:[%s2 + $0x170] sm:$0xff]
    %v92 = vld [vmem:[%s2 + $0x178] sm:$0xff]
    %v93 = vld [vmem:[%s2 + $0x180] sm:$0xff]
    %v94 = vld [vmem:[%s2 + $0x188] sm:$0xff]
    %v95 = vld [vmem:[%s2 + $0x190] sm:$0xff]
    %v96 = vld [vmem:[%s2 + $0x198] sm:$0xff]
    %v97 = vld [vmem:[%s2 + $0x1a0] sm:$0xff]
    %v98 = vld [vmem:[%s2 + $0x1a8] sm:$0xff]
    %v99 = vld [vmem:[%s2 + $0x1b0] sm:$0xff]
    %v100 = vld [vmem:[%s2 + $0x1b8] sm:$0xff]
    %v101 = vld [vmem:[%s2 + $0x1c0] sm:$0xff]
    %v102 = vld [vmem:[%s2 + $0x1c8] sm:$0xff]
    %v103 = vld [vmem:[%s2 + $0x1d0] sm:$0xff]
    %v104 = vld [vmem:[%s2 + $0x1d8] sm:$0xff]
    %v105 = vld [vmem:[%s2 + $0x1e0] sm:$0xff]
    %v106 = vld [vmem:[%s2 + $0x1e8] sm:$0xff]
    %v107 = vld [vmem:[%s2 + $0x1f0] sm:$0xff]
    %v108 = vld [vmem:[%s2 + $0x1f8] sm:$0xff]
    %v109 = vld [vmem:[%s2 + $0x200] sm:$0xff]
    %v110 = vld [vmem:[%s2 + $0x208] sm:$0xff]
    %v111 = vld [vmem:[%s2 + $0x210] sm:$0xff]
    %v112 = vld [vmem:[%s2 + $0x218] sm:$0xff]
    %v113 = vld [vmem:[%s2 + $0x220] sm:$0xff]
    %v114 = vld [vmem:[%s2 + $0x228] sm:$0xff]
    %v115 = vld [vmem:[%s2 + $0x230] sm:$0xff]
    %v116 = vld [vmem:[%s2 + $0x238] sm:$0xff]
    %v117 = vld [vmem:[%s2 + $0x240] sm:$0xff]
    %v118 = vld [vmem:[%s2 + $0x248] sm:$0xff]
    %v119 = vld [vmem:[%s2 + $0x250] sm:$0xff]
    %v120 = vld [vmem:[%s2 + $0x258] sm:$0xff]
    %v121 = vld [vmem:[%s2 + $0x260] sm:$0xff]
    %v122 = vld [vmem:[%s2 + $0x268] sm:$0xff]
    %v123 = vld [vmem:[%s2 + $0x270] sm:$0xff]
    %v124 = vld [vmem:[%s2 + $0x278] sm:$0xff]
    %v125 = vld [vmem:[%s2 + $0x280] sm:$0xff]
    %v126 = vld [vmem:[%s2 + $0x288] sm:$0xff]
    %v127 = vld [vmem:[%s2 + $0x290] sm:$0xff]
    %v128 = vld [vmem:[%s2 + $0x298] sm:$0xff]
    %v129 = vld [vmem:[%s2 + $0x2a0] sm:$0xff]
    %v130 = vld [vmem:[%s2 + $0x2a8] sm:$0xff]
    %v131 = vld [vmem:[%s2 + $0x2b0] sm:$0xff]
    %v132 = vld [vmem:[%s2 + $0x2b8] sm:$0xff]
    %v133 = vld [vmem:[%s2 + $0x2c0] sm:$0xff]
    %v134 = vld [vmem:[%s2 + $0x2c8] sm:$0xff]
    %v135 = vld [vmem:[%s2 + $0x2d0] sm:$0xff]
    %v136 = vld [vmem:[%s2 + $0x2d8] sm:$0xff]
    %v137 = vld [vmem:[%s2 + $0x2e0] sm:$0xff]
    %v138 = vld [vmem:[%s2 + $0x2e8] sm:$0xff]
    %v139 = vld [vmem:[%s2 + $0x2f0] sm:$0xff]
    %v140 = vld [vmem:[%s2 + $0x2f8] sm:$0xff]
    %v141 = vld [vmem:[%s10] sm:$0x1]
    %v142 = vlaneseq
    %v143 = vshrl.u32 %v142, 7
    %v144 = vsub.s32 0, %v143
    %v145 = vrot.slane %v141, %v144
    %146 = vmatprep.subr.mxu0 0.0
    %147 = vmatpush1.msra.mxu0 %v45
    %148 = vmatprep.subr.mxu0 0.0
    %149 = vmatpush1.msra.mxu0 %v46
    %150 = vmatprep.subr.mxu0 0.0
    %151 = vmatpush1.msra.mxu0 %v47
    %152 = vmatprep.subr.mxu0 0.0
    %153 = vmatpush1.msra.mxu0 %v48
    %154 = vmatprep.subr.mxu0 0.0
    %155 = vmatpush1.msra.mxu0 %v49
    %156 = vmatprep.subr.mxu0 0.0
    %157 = vmatpush1.msra.mxu0 %v50
    %158 = vmatprep.subr.mxu0 0.0
    %159 = vmatpush1.msra.mxu0 %v51
    %160 = vmatprep.subr.mxu0 0.0
    %161 = vmatpush1.msra.mxu0 %v52
    %162 = vmatprep.subr.mxu0 0.0
    %163 = vmatpush1.msra.mxu0 %v53
    %164 = vmatprep.subr.mxu0 0.0
    %165 = vmatpush1.msra.mxu0 %v54
    %166 = vmatprep.subr.mxu0 0.0
    %167 = vmatpush1.msra.mxu0 %v55
    %168 = vmatprep.subr.mxu0 0.0
    %169 = vmatpush1.msra.mxu0 %v56
    %170 = vmatprep.subr.mxu0 0.0
    %171 = vmatpush1.msra.mxu0 %v57
    %172 = vmatprep.subr.mxu0 0.0
    %173 = vmatpush1.msra.mxu0 %v58
    %174 = vmatprep.subr.mxu0 0.0
    %175 = vmatpush1.msra.mxu0 %v59
    %176 = vmatprep.subr.mxu0 0.0
    %177 = vmatpush1.msra.mxu0 %v60
    %178 = vmatprep.subr.mxu0 0.0
    %179 = vmatpush1.msra.mxu0 %v61
    %180 = vmatprep.subr.mxu0 0.0
    %181 = vmatpush1.msra.mxu0 %v62
    %182 = vmatprep.subr.mxu0 0.0
    %183 = vmatpush1.msra.mxu0 %v63
    %184 = vmatprep.subr.mxu0 0.0
    %185 = vmatpush1.msra.mxu0 %v64
    %186 = vmatprep.subr.mxu0 0.0
    %187 = vmatpush1.msra.mxu0 %v65
    %188 = vmatprep.subr.mxu0 0.0
    %189 = vmatpush1.msra.mxu0 %v66
    %190 = vmatprep.subr.mxu0 0.0
    %191 = vmatpush1.msra.mxu0 %v67
    %192 = vmatprep.subr.mxu0 0.0
    %193 = vmatpush1.msra.mxu0 %v68
    %194 = vmatprep.subr.mxu0 0.0
    %195 = vmatpush1.msra.mxu0 %v69
    %196 = vmatprep.subr.mxu0 0.0
    %197 = vmatpush1.msra.mxu0 %v70
    %198 = vmatprep.subr.mxu0 0.0
    %199 = vmatpush1.msra.mxu0 %v71
    %200 = vmatprep.subr.mxu0 0.0
    %201 = vmatpush1.msra.mxu0 %v72
    %202 = vmatprep.subr.mxu0 0.0
    %203 = vmatpush1.msra.mxu0 %v73
    %204 = vmatprep.subr.mxu0 0.0
    %205 = vmatpush1.msra.mxu0 %v74
    %206 = vmatprep.subr.mxu0 0.0
    %207 = vmatpush1.msra.mxu0 %v75
    %208 = vmatprep.subr.mxu0 0.0
    %209 = vmatpush1.msra.mxu0 %v76
    %210 = vmatprep.mubr.f32.mxu0 %v40
    %211 = vmatmul.mubr.f32.gmra.mrb[0].mxu0 %v39
    %v212 = vpop.f32.mrb[0].mxu0
    %v213 = vadd.f32 %v145, %v212
    %v214 = vpop.f32.mrb[0].mxu0
    %215 = vdwg.mxu0
    %216 = vmatprep.subr.mxu0 0.0
    %217 = vmatpush1.msra.mxu0 %v77
    %218 = vmatprep.subr.mxu0 0.0
    %219 = vmatpush1.msra.mxu0 %v78
    %220 = vmatprep.subr.mxu0 0.0
    %221 = vmatpush1.msra.mxu0 %v79
    %222 = vmatprep.subr.mxu0 0.0
    %223 = vmatpush1.msra.mxu0 %v80
    %224 = vmatprep.subr.mxu0 0.0
    %225 = vmatpush1.msra.mxu0 %v81
    %226 = vmatprep.subr.mxu0 0.0
    %227 = vmatpush1.msra.mxu0 %v82
    %228 = vmatprep.subr.mxu0 0.0
    %229 = vmatpush1.msra.mxu0 %v83
    %230 = vmatprep.subr.mxu0 0.0
    %231 = vmatpush1.msra.mxu0 %v84
    %232 = vmatprep.subr.mxu0 0.0
    %233 = vmatpush1.msra.mxu0 %v85
    %234 = vmatprep.subr.mxu0 0.0
    %235 = vmatpush1.msra.mxu0 %v86
    %236 = vmatprep.subr.mxu0 0.0
    %237 = vmatpush1.msra.mxu0 %v87
    %238 = vmatprep.subr.mxu0 0.0
    %239 = vmatpush1.msra.mxu0 %v88
    %240 = vmatprep.subr.mxu0 0.0
    %241 = vmatpush1.msra.mxu0 %v89
    %242 = vmatprep.subr.mxu0 0.0
    %243 = vmatpush1.msra.mxu0 %v90
    %244 = vmatprep.subr.mxu0 0.0
    %245 = vmatpush1.msra.mxu0 %v91
    %246 = vmatprep.subr.mxu0 0.0
    %247 = vmatpush1.msra.mxu0 %v92
    %248 = vmatprep.subr.mxu0 0.0
    %249 = vmatpush1.msra.mxu0 %v93
    %250 = vmatprep.subr.mxu0 0.0
    %251 = vmatpush1.msra.mxu0 %v94
    %252 = vmatprep.subr.mxu0 0.0
    %253 = vmatpush1.msra.mxu0 %v95
    %254 = vmatprep.subr.mxu0 0.0
    %255 = vmatpush1.msra.mxu0 %v96
    %256 = vmatprep.subr.mxu0 0.0
    %257 = vmatpush1.msra.mxu0 %v97
    %258 = vmatprep.subr.mxu0 0.0
    %259 = vmatpush1.msra.mxu0 %v98
    %260 = vmatprep.subr.mxu0 0.0
    %261 = vmatpush1.msra.mxu0 %v99
    %262 = vmatprep.subr.mxu0 0.0
    %263 = vmatpush1.msra.mxu0 %v100
    %264 = vmatprep.subr.mxu0 0.0
    %265 = vmatpush1.msra.mxu0 %v101
    %266 = vmatprep.subr.mxu0 0.0
    %267 = vmatpush1.msra.mxu0 %v102
    %268 = vmatprep.subr.mxu0 0.0
    %269 = vmatpush1.msra.mxu0 %v103
    %270 = vmatprep.subr.mxu0 0.0
    %271 = vmatpush1.msra.mxu0 %v104
    %272 = vmatprep.subr.mxu0 0.0
    %273 = vmatpush1.msra.mxu0 %v105
    %274 = vmatprep.subr.mxu0 0.0
    %275 = vmatpush1.msra.mxu0 %v106
    %276 = vmatprep.subr.mxu0 0.0
    %277 = vmatpush1.msra.mxu0 %v107
    %278 = vmatprep.subr.mxu0 0.0
    %279 = vmatpush1.msra.mxu0 %v108
    %280 = vmatprep.mubr.f32.mxu0 %v42
    %281 = vmatmul.mubr.f32.gmra.mrb[0].mxu0 %v41
    %v282 = vpop.f32.mrb[0].mxu0
    %v283 = vadd.f32 %v213, %v282
    %v284 = vpop.f32.mrb[0].mxu0
    %285 = vdwg.mxu0
    %286 = vmatprep.subr.mxu0 0.0
    %287 = vmatpush1.msra.mxu0 %v109
    %288 = vmatprep.subr.mxu0 0.0
    %289 = vmatpush1.msra.mxu0 %v110
    %290 = vmatprep.subr.mxu0 0.0
    %291 = vmatpush1.msra.mxu0 %v111
    %292 = vmatprep.subr.mxu0 0.0
    %293 = vmatpush1.msra.mxu0 %v112
    %294 = vmatprep.subr.mxu0 0.0
    %295 = vmatpush1.msra.mxu0 %v113
    %296 = vmatprep.subr.mxu0 0.0
    %297 = vmatpush1.msra.mxu0 %v114
    %298 = vmatprep.subr.mxu0 0.0
    %299 = vmatpush1.msra.mxu0 %v115
    %300 = vmatprep.subr.mxu0 0.0
    %301 = vmatpush1.msra.mxu0 %v116
    %302 = vmatprep.subr.mxu0 0.0
    %303 = vmatpush1.msra.mxu0 %v117
    %304 = vmatprep.subr.mxu0 0.0
    %305 = vmatpush1.msra.mxu0 %v118
    %306 = vmatprep.subr.mxu0 0.0
    %307 = vmatpush1.msra.mxu0 %v119
    %308 = vmatprep.subr.mxu0 0.0
    %309 = vmatpush1.msra.mxu0 %v120
    %310 = vmatprep.subr.mxu0 0.0
    %311 = vmatpush1.msra.mxu0 %v121
    %312 = vmatprep.subr.mxu0 0.0
    %313 = vmatpush1.msra.mxu0 %v122
    %314 = vmatprep.subr.mxu0 0.0
    %315 = vmatpush1.msra.mxu0 %v123
    %316 = vmatprep.subr.mxu0 0.0
    %317 = vmatpush1.msra.mxu0 %v124
    %318 = vmatprep.subr.mxu0 0.0
    %319 = vmatpush1.msra.mxu0 %v125
    %320 = vmatprep.subr.mxu0 0.0
    %321 = vmatpush1.msra.mxu0 %v126
    %322 = vmatprep.subr.mxu0 0.0
    %323 = vmatpush1.msra.mxu0 %v127
    %324 = vmatprep.subr.mxu0 0.0
    %325 = vmatpush1.msra.mxu0 %v128
    %326 = vmatprep.subr.mxu0 0.0
    %327 = vmatpush1.msra.mxu0 %v129
    %328 = vmatprep.subr.mxu0 0.0
    %329 = vmatpush1.msra.mxu0 %v130
    %330 = vmatprep.subr.mxu0 0.0
    %331 = vmatpush1.msra.mxu0 %v131
    %332 = vmatprep.subr.mxu0 0.0
    %333 = vmatpush1.msra.mxu0 %v132
    %334 = vmatprep.subr.mxu0 0.0
    %335 = vmatpush1.msra.mxu0 %v133
    %336 = vmatprep.subr.mxu0 0.0
    %337 = vmatpush1.msra.mxu0 %v134
    %338 = vmatprep.subr.mxu0 0.0
    %339 = vmatpush1.msra.mxu0 %v135
    %340 = vmatprep.subr.mxu0 0.0
    %341 = vmatpush1.msra.mxu0 %v136
    %342 = vmatprep.subr.mxu0 0.0
    %343 = vmatpush1.msra.mxu0 %v137
    %344 = vmatprep.subr.mxu0 0.0
    %345 = vmatpush1.msra.mxu0 %v138
    %346 = vmatprep.subr.mxu0 0.0
    %347 = vmatpush1.msra.mxu0 %v139
    %348 = vmatprep.subr.mxu0 0.0
    %349 = vmatpush1.msra.mxu0 %v140
    %350 = vmatprep.mubr.f32.mxu0 %v44
    %351 = vmatmul.mubr.f32.gmra.mrb[0].mxu0 %v43
    %v352 = vpop.f32.mrb[0].mxu0
    %v353 = vadd.f32 %v283, %v352
    %v354 = vpop.f32.mrb[0].mxu0
    %355 = vdwg.mxu0
    %v356 = vld [vmem:[%s1] sm:$0xff]
    %v357 = vld [vmem:[%s3] sm:$0xff]
    %v358 = vld [vmem:[%s3 + $0x8] sm:$0xff]
    %v359 = vld [vmem:[%s3 + $0x10] sm:$0xff]
    %v360 = vld [vmem:[%s10 + $0x1] sm:$0x1]
    %v361 = vlaneseq
    %v362 = vshrl.u32 %v361, 7
    %v363 = vsub.s32 0, %v362
    %v364 = vrot.slane %v360, %v363
    %vm365 = vcmask 195584
    %v367 = vsel %vm365, %v356, 0
    %369 = vmatprep.subr.mxu0 0.0
    %370 = vmatpush1.msra.mxu0 %v357
    %371 = vmatprep.subr.mxu0 0.0
    %372 = vmatpush1.msra.mxu0 %v358
    %373 = vmatprep.subr.mxu0 0.0
    %374 = vmatpush1.msra.mxu0 %v359
    %375 = vmatprep.subr.mxu0 0.0
    %376 = vmatpush1.msra.mxu0 0.0
    %377 = vmatprep.subr.mxu0 0.0
    %378 = vmatpush1.msra.mxu0 0.0
    %379 = vmatprep.subr.mxu0 0.0
    %380 = vmatpush1.msra.mxu0 0.0
    %381 = vmatprep.subr.mxu0 0.0
    %382 = vmatpush1.msra.mxu0 0.0
    %383 = vmatprep.subr.mxu0 0.0
    %384 = vmatpush1.msra.mxu0 0.0
    %385 = vmatprep.subr.mxu0 0.0
    %386 = vmatpush1.msra.mxu0 0.0
    %387 = vmatprep.subr.mxu0 0.0
    %388 = vmatpush1.msra.mxu0 0.0
    %389 = vmatprep.subr.mxu0 0.0
    %390 = vmatpush1.msra.mxu0 0.0
    %391 = vmatprep.subr.mxu0 0.0
    %392 = vmatpush1.msra.mxu0 0.0
    %393 = vmatprep.subr.mxu0 0.0
    %394 = vmatpush1.msra.mxu0 0.0
    %395 = vmatprep.subr.mxu0 0.0
    %396 = vmatpush1.msra.mxu0 0.0
    %397 = vmatprep.subr.mxu0 0.0
    %398 = vmatpush1.msra.mxu0 0.0
    %399 = vmatprep.subr.mxu0 0.0
    %400 = vmatpush1.msra.mxu0 0.0
    %401 = vmatprep.subr.mxu0 0.0
    %402 = vmatpush1.msra.mxu0 0.0
    %403 = vmatprep.subr.mxu0 0.0
    %404 = vmatpush1.msra.mxu0 0.0
    %405 = vmatprep.subr.mxu0 0.0
    %406 = vmatpush1.msra.mxu0 0.0
    %407 = vmatprep.subr.mxu0 0.0
    %408 = vmatpush1.msra.mxu0 0.0
    %409 = vmatprep.subr.mxu0 0.0
    %410 = vmatpush1.msra.mxu0 0.0
    %411 = vmatprep.subr.mxu0 0.0
    %412 = vmatpush1.msra.mxu0 0.0
    %413 = vmatprep.subr.mxu0 0.0
    %414 = vmatpush1.msra.mxu0 0.0
    %415 = vmatprep.subr.mxu0 0.0
    %416 = vmatpush1.msra.mxu0 0.0
    %417 = vmatprep.subr.mxu0 0.0
    %418 = vmatpush1.msra.mxu0 0.0
    %419 = vmatprep.subr.mxu0 0.0
    %420 = vmatpush1.msra.mxu0 0.0
    %421 = vmatprep.subr.mxu0 0.0
    %422 = vmatpush1.msra.mxu0 0.0
    %423 = vmatprep.subr.mxu0 0.0
    %424 = vmatpush1.msra.mxu0 0.0
    %425 = vmatprep.subr.mxu0 0.0
    %426 = vmatpush1.msra.mxu0 0.0
    %427 = vmatprep.subr.mxu0 0.0
    %428 = vmatpush1.msra.mxu0 0.0
    %429 = vmatprep.subr.mxu0 0.0
    %430 = vmatpush1.msra.mxu0 0.0
    %431 = vmatprep.subr.mxu0 0.0
    %432 = vmatpush1.msra.mxu0 0.0
    %433 = vmatprep.mubr.f32.mxu0 0.0
    %434 = vmatmul.mubr.f32.gmra.mrb[0].mxu0 %v367
    %v435 = vpop.f32.mrb[0].mxu0
    %v436 = vadd.f32 %v364, %v435
    %v437 = vpop.f32.mrb[0].mxu0
    %438 = vdwg.mxu0
    %v439 = vmul.f32 %v353, %v353
    %vm440 = vcmask 392192
    %v441 = vsel %vm440, %v439, 0.0
    %442 = vadd.xlane.f32.xlu0 %v441
    %v443 = vpop.xlane.xlu0 %442
    %v444 = vmax.f32 %v443, 1e-24
    %v445 = vrsqrt.pop %v444
    %v446 = vmul.f32 %v353, %v445
    %v447 = vmul.f32 %v436, %v436
    %vm448 = vcmask 130048
    %v449 = vsel %vm448, %v447, 0.0
    %450 = vadd.xlane.f32.xlu0 %v449
    %v451 = vpop.xlane.xlu0 %450
    %v452 = vmax.f32 %v451, 1e-24
    %v453 = vrsqrt.pop %v452
    %v454 = vmul.f32 %v436, %v453
    %v455 = vld [vmem:[%s4] sm:$0xff]
    %v456 = vld [vmem:[%s4 + $0x8] sm:$0xff]
    %v457 = vld [vmem:[%s4 + $0x10] sm:$0xff]
    %v458 = vld [vmem:[%s4 + $0x18] sm:$0xff]
    %v459 = vld [vmem:[%s4 + $0x20] sm:$0xff]
    %v460 = vld [vmem:[%s4 + $0x28] sm:$0xff]
    %v461 = vld [vmem:[%s5] sm:$0xff]
    %v462 = vld [vmem:[%s5 + $0x8] sm:$0xff]
    %v464 = vsel %vm448, %v454, 0
    %466 = vmatprep.subr.mxu0 0.0
    %467 = vmatpush1.msra.mxu0 %v461
    %468 = vmatprep.subr.mxu0 0.0
    %469 = vmatpush1.msra.mxu0 %v462
    %470 = vmatprep.subr.mxu0 0.0
    %471 = vmatpush1.msra.mxu0 0.0
    %472 = vmatprep.subr.mxu0 0.0
    %473 = vmatpush1.msra.mxu0 0.0
    %474 = vmatprep.subr.mxu0 0.0
    %475 = vmatpush1.msra.mxu0 0.0
    %476 = vmatprep.subr.mxu0 0.0
    %477 = vmatpush1.msra.mxu0 0.0
    %478 = vmatprep.subr.mxu0 0.0
    %479 = vmatpush1.msra.mxu0 0.0
    %480 = vmatprep.subr.mxu0 0.0
    %481 = vmatpush1.msra.mxu0 0.0
    %482 = vmatprep.subr.mxu0 0.0
    %483 = vmatpush1.msra.mxu0 0.0
    %484 = vmatprep.subr.mxu0 0.0
    %485 = vmatpush1.msra.mxu0 0.0
    %486 = vmatprep.subr.mxu0 0.0
    %487 = vmatpush1.msra.mxu0 0.0
    %488 = vmatprep.subr.mxu0 0.0
    %489 = vmatpush1.msra.mxu0 0.0
    %490 = vmatprep.subr.mxu0 0.0
    %491 = vmatpush1.msra.mxu0 0.0
    %492 = vmatprep.subr.mxu0 0.0
    %493 = vmatpush1.msra.mxu0 0.0
    %494 = vmatprep.subr.mxu0 0.0
    %495 = vmatpush1.msra.mxu0 0.0
    %496 = vmatprep.subr.mxu0 0.0
    %497 = vmatpush1.msra.mxu0 0.0
    %498 = vmatprep.subr.mxu0 0.0
    %499 = vmatpush1.msra.mxu0 0.0
    %500 = vmatprep.subr.mxu0 0.0
    %501 = vmatpush1.msra.mxu0 0.0
    %502 = vmatprep.subr.mxu0 0.0
    %503 = vmatpush1.msra.mxu0 0.0
    %504 = vmatprep.subr.mxu0 0.0
    %505 = vmatpush1.msra.mxu0 0.0
    %506 = vmatprep.subr.mxu0 0.0
    %507 = vmatpush1.msra.mxu0 0.0
    %508 = vmatprep.subr.mxu0 0.0
    %509 = vmatpush1.msra.mxu0 0.0
    %510 = vmatprep.subr.mxu0 0.0
    %511 = vmatpush1.msra.mxu0 0.0
    %512 = vmatprep.subr.mxu0 0.0
    %513 = vmatpush1.msra.mxu0 0.0
    %514 = vmatprep.subr.mxu0 0.0
    %515 = vmatpush1.msra.mxu0 0.0
    %516 = vmatprep.subr.mxu0 0.0
    %517 = vmatpush1.msra.mxu0 0.0
    %518 = vmatprep.subr.mxu0 0.0
    %519 = vmatpush1.msra.mxu0 0.0
    %520 = vmatprep.subr.mxu0 0.0
    %521 = vmatpush1.msra.mxu0 0.0
    %522 = vmatprep.subr.mxu0 0.0
    %523 = vmatpush1.msra.mxu0 0.0
    %524 = vmatprep.subr.mxu0 0.0
    %525 = vmatpush1.msra.mxu0 0.0
    %526 = vmatprep.subr.mxu0 0.0
    %527 = vmatpush1.msra.mxu0 0.0
    %528 = vmatprep.subr.mxu0 0.0
    %529 = vmatpush1.msra.mxu0 0.0
    %530 = vmatprep.mubr.f32.mxu0 0.0
    %531 = vmatmul.mubr.f32.gmra.mrb[0].mxu0 %v464
    %v532 = vpop.f32.mrb[0].mxu0
    %v533 = vadd.f32 0.0, %v532
    %v534 = vpop.f32.mrb[0].mxu0
    %535 = vdwg.mxu0
    %v537 = vsel %vm440, %v446, 0
    %539 = vmatprep.subr.mxu0 0.0
    %540 = vmatpush1.msra.mxu0 %v455
    %541 = vmatprep.subr.mxu0 0.0
    %542 = vmatpush1.msra.mxu0 %v456
    %543 = vmatprep.subr.mxu0 0.0
    %544 = vmatpush1.msra.mxu0 %v457
    %545 = vmatprep.subr.mxu0 0.0
    %546 = vmatpush1.msra.mxu0 %v458
    %547 = vmatprep.subr.mxu0 0.0
    %548 = vmatpush1.msra.mxu0 %v459
    %549 = vmatprep.subr.mxu0 0.0
    %550 = vmatpush1.msra.mxu0 %v460
    %551 = vmatprep.subr.mxu0 0.0
    %552 = vmatpush1.msra.mxu0 0.0
    %553 = vmatprep.subr.mxu0 0.0
    %554 = vmatpush1.msra.mxu0 0.0
    %555 = vmatprep.subr.mxu0 0.0
    %556 = vmatpush1.msra.mxu0 0.0
    %557 = vmatprep.subr.mxu0 0.0
    %558 = vmatpush1.msra.mxu0 0.0
    %559 = vmatprep.subr.mxu0 0.0
    %560 = vmatpush1.msra.mxu0 0.0
    %561 = vmatprep.subr.mxu0 0.0
    %562 = vmatpush1.msra.mxu0 0.0
    %563 = vmatprep.subr.mxu0 0.0
    %564 = vmatpush1.msra.mxu0 0.0
    %565 = vmatprep.subr.mxu0 0.0
    %566 = vmatpush1.msra.mxu0 0.0
    %567 = vmatprep.subr.mxu0 0.0
    %568 = vmatpush1.msra.mxu0 0.0
    %569 = vmatprep.subr.mxu0 0.0
    %570 = vmatpush1.msra.mxu0 0.0
    %571 = vmatprep.subr.mxu0 0.0
    %572 = vmatpush1.msra.mxu0 0.0
    %573 = vmatprep.subr.mxu0 0.0
    %574 = vmatpush1.msra.mxu0 0.0
    %575 = vmatprep.subr.mxu0 0.0
    %576 = vmatpush1.msra.mxu0 0.0
    %577 = vmatprep.subr.mxu0 0.0
    %578 = vmatpush1.msra.mxu0 0.0
    %579 = vmatprep.subr.mxu0 0.0
    %580 = vmatpush1.msra.mxu0 0.0
    %581 = vmatprep.subr.mxu0 0.0
    %582 = vmatpush1.msra.mxu0 0.0
    %583 = vmatprep.subr.mxu0 0.0
    %584 = vmatpush1.msra.mxu0 0.0
    %585 = vmatprep.subr.mxu0 0.0
    %586 = vmatpush1.msra.mxu0 0.0
    %587 = vmatprep.subr.mxu0 0.0
    %588 = vmatpush1.msra.mxu0 0.0
    %589 = vmatprep.subr.mxu0 0.0
    %590 = vmatpush1.msra.mxu0 0.0
    %591 = vmatprep.subr.mxu0 0.0
    %592 = vmatpush1.msra.mxu0 0.0
    %593 = vmatprep.subr.mxu0 0.0
    %594 = vmatpush1.msra.mxu0 0.0
    %595 = vmatprep.subr.mxu0 0.0
    %596 = vmatpush1.msra.mxu0 0.0
    %597 = vmatprep.subr.mxu0 0.0
    %598 = vmatpush1.msra.mxu0 0.0
    %599 = vmatprep.subr.mxu0 0.0
    %600 = vmatpush1.msra.mxu0 0.0
    %601 = vmatprep.subr.mxu0 0.0
    %602 = vmatpush1.msra.mxu0 0.0
    %603 = vmatprep.mubr.f32.mxu0 0.0
    %604 = vmatmul.mubr.f32.gmra.mrb[0].mxu0 %v537
    %v605 = vpop.f32.mrb[0].mxu0
    %v606 = vadd.f32 %v533, %v605
    %v607 = vpop.f32.mrb[0].mxu0
    %608 = vdwg.mxu0
    %v609 = vld [vmem:[%s6] sm:$0xff]
    %v610 = vld [vmem:[%s6 + $0x8] sm:$0xff]
    %v611 = vld [vmem:[%s6 + $0x10] sm:$0xff]
    %v612 = vld [vmem:[%s6 + $0x18] sm:$0xff]
    %v613 = vld [vmem:[%s6 + $0x20] sm:$0xff]
    %v614 = vld [vmem:[%s6 + $0x28] sm:$0xff]
    %v615 = vld [vmem:[%s6 + $0x30] sm:$0xff]
    %v616 = vld [vmem:[%s6 + $0x38] sm:$0xff]
    %v617 = vld [vmem:[%s10 + $0x2] sm:$0x1]
    %v618 = vlaneseq
    %v619 = vshrl.u32 %v618, 7
    %v620 = vsub.s32 0, %v619
    %v621 = vrot.slane %v617, %v620
    %vm622 = vcmask 523264
    %v624 = vsel %vm622, %v606, 0
    %626 = vmatprep.subr.mxu0 0.0
    %627 = vmatpush1.msra.mxu0 %v609
    %628 = vmatprep.subr.mxu0 0.0
    %629 = vmatpush1.msra.mxu0 %v610
    %630 = vmatprep.subr.mxu0 0.0
    %631 = vmatpush1.msra.mxu0 %v611
    %632 = vmatprep.subr.mxu0 0.0
    %633 = vmatpush1.msra.mxu0 %v612
    %634 = vmatprep.subr.mxu0 0.0
    %635 = vmatpush1.msra.mxu0 %v613
    %636 = vmatprep.subr.mxu0 0.0
    %637 = vmatpush1.msra.mxu0 %v614
    %638 = vmatprep.subr.mxu0 0.0
    %639 = vmatpush1.msra.mxu0 %v615
    %640 = vmatprep.subr.mxu0 0.0
    %641 = vmatpush1.msra.mxu0 %v616
    %642 = vmatprep.subr.mxu0 0.0
    %643 = vmatpush1.msra.mxu0 0.0
    %644 = vmatprep.subr.mxu0 0.0
    %645 = vmatpush1.msra.mxu0 0.0
    %646 = vmatprep.subr.mxu0 0.0
    %647 = vmatpush1.msra.mxu0 0.0
    %648 = vmatprep.subr.mxu0 0.0
    %649 = vmatpush1.msra.mxu0 0.0
    %650 = vmatprep.subr.mxu0 0.0
    %651 = vmatpush1.msra.mxu0 0.0
    %652 = vmatprep.subr.mxu0 0.0
    %653 = vmatpush1.msra.mxu0 0.0
    %654 = vmatprep.subr.mxu0 0.0
    %655 = vmatpush1.msra.mxu0 0.0
    %656 = vmatprep.subr.mxu0 0.0
    %657 = vmatpush1.msra.mxu0 0.0
    %658 = vmatprep.subr.mxu0 0.0
    %659 = vmatpush1.msra.mxu0 0.0
    %660 = vmatprep.subr.mxu0 0.0
    %661 = vmatpush1.msra.mxu0 0.0
    %662 = vmatprep.subr.mxu0 0.0
    %663 = vmatpush1.msra.mxu0 0.0
    %664 = vmatprep.subr.mxu0 0.0
    %665 = vmatpush1.msra.mxu0 0.0
    %666 = vmatprep.subr.mxu0 0.0
    %667 = vmatpush1.msra.mxu0 0.0
    %668 = vmatprep.subr.mxu0 0.0
    %669 = vmatpush1.msra.mxu0 0.0
    %670 = vmatprep.subr.mxu0 0.0
    %671 = vmatpush1.msra.mxu0 0.0
    %672 = vmatprep.subr.mxu0 0.0
    %673 = vmatpush1.msra.mxu0 0.0
    %674 = vmatprep.subr.mxu0 0.0
    %675 = vmatpush1.msra.mxu0 0.0
    %676 = vmatprep.subr.mxu0 0.0
    %677 = vmatpush1.msra.mxu0 0.0
    %678 = vmatprep.subr.mxu0 0.0
    %679 = vmatpush1.msra.mxu0 0.0
    %680 = vmatprep.subr.mxu0 0.0
    %681 = vmatpush1.msra.mxu0 0.0
    %682 = vmatprep.subr.mxu0 0.0
    %683 = vmatpush1.msra.mxu0 0.0
    %684 = vmatprep.subr.mxu0 0.0
    %685 = vmatpush1.msra.mxu0 0.0
    %686 = vmatprep.subr.mxu0 0.0
    %687 = vmatpush1.msra.mxu0 0.0
    %688 = vmatprep.subr.mxu0 0.0
    %689 = vmatpush1.msra.mxu0 0.0
    %690 = vmatprep.mubr.f32.mxu0 0.0
    %691 = vmatmul.mubr.f32.gmra.mrb[0].mxu0 %v624
    %v692 = vpop.f32.mrb[0].mxu0
    %v693 = vadd.f32 %v621, %v692
    %v694 = vpop.f32.mrb[0].mxu0
    %695 = vdwg.mxu0
    %v696 = vld [vmem:[%s7] sm:$0xff]
    %v697 = vld [vmem:[%s7 + $0x8] sm:$0xff]
    %v698 = vld [vmem:[%s7 + $0x10] sm:$0xff]
    %v699 = vld [vmem:[%s7 + $0x18] sm:$0xff]
    %v700 = vld [vmem:[%s7 + $0x20] sm:$0xff]
    %v701 = vld [vmem:[%s7 + $0x28] sm:$0xff]
    %v702 = vld [vmem:[%s7 + $0x30] sm:$0xff]
    %v703 = vld [vmem:[%s7 + $0x38] sm:$0xff]
    %v704 = vld [vmem:[%s10 + $0x3] sm:$0x1]
    %v705 = vlaneseq
    %v706 = vshrl.u32 %v705, 7
    %v707 = vsub.s32 0, %v706
    %v708 = vrot.slane %v704, %v707
    %v710 = vsel %vm622, %v693, 0
    %712 = vmatprep.subr.mxu0 0.0
    %713 = vmatpush1.msra.mxu0 %v696
    %714 = vmatprep.subr.mxu0 0.0
    %715 = vmatpush1.msra.mxu0 %v697
    %716 = vmatprep.subr.mxu0 0.0
    %717 = vmatpush1.msra.mxu0 %v698
    %718 = vmatprep.subr.mxu0 0.0
    %719 = vmatpush1.msra.mxu0 %v699
    %720 = vmatprep.subr.mxu0 0.0
    %721 = vmatpush1.msra.mxu0 %v700
    %722 = vmatprep.subr.mxu0 0.0
    %723 = vmatpush1.msra.mxu0 %v701
    %724 = vmatprep.subr.mxu0 0.0
    %725 = vmatpush1.msra.mxu0 %v702
    %726 = vmatprep.subr.mxu0 0.0
    %727 = vmatpush1.msra.mxu0 %v703
    %728 = vmatprep.subr.mxu0 0.0
    %729 = vmatpush1.msra.mxu0 0.0
    %730 = vmatprep.subr.mxu0 0.0
    %731 = vmatpush1.msra.mxu0 0.0
    %732 = vmatprep.subr.mxu0 0.0
    %733 = vmatpush1.msra.mxu0 0.0
    %734 = vmatprep.subr.mxu0 0.0
    %735 = vmatpush1.msra.mxu0 0.0
    %736 = vmatprep.subr.mxu0 0.0
    %737 = vmatpush1.msra.mxu0 0.0
    %738 = vmatprep.subr.mxu0 0.0
    %739 = vmatpush1.msra.mxu0 0.0
    %740 = vmatprep.subr.mxu0 0.0
    %741 = vmatpush1.msra.mxu0 0.0
    %742 = vmatprep.subr.mxu0 0.0
    %743 = vmatpush1.msra.mxu0 0.0
    %744 = vmatprep.subr.mxu0 0.0
    %745 = vmatpush1.msra.mxu0 0.0
    %746 = vmatprep.subr.mxu0 0.0
    %747 = vmatpush1.msra.mxu0 0.0
    %748 = vmatprep.subr.mxu0 0.0
    %749 = vmatpush1.msra.mxu0 0.0
    %750 = vmatprep.subr.mxu0 0.0
    %751 = vmatpush1.msra.mxu0 0.0
    %752 = vmatprep.subr.mxu0 0.0
    %753 = vmatpush1.msra.mxu0 0.0
    %754 = vmatprep.subr.mxu0 0.0
    %755 = vmatpush1.msra.mxu0 0.0
    %756 = vmatprep.subr.mxu0 0.0
    %757 = vmatpush1.msra.mxu0 0.0
    %758 = vmatprep.subr.mxu0 0.0
    %759 = vmatpush1.msra.mxu0 0.0
    %760 = vmatprep.subr.mxu0 0.0
    %761 = vmatpush1.msra.mxu0 0.0
    %762 = vmatprep.subr.mxu0 0.0
    %763 = vmatpush1.msra.mxu0 0.0
    %764 = vmatprep.subr.mxu0 0.0
    %765 = vmatpush1.msra.mxu0 0.0
    %766 = vmatprep.subr.mxu0 0.0
    %767 = vmatpush1.msra.mxu0 0.0
    %768 = vmatprep.subr.mxu0 0.0
    %769 = vmatpush1.msra.mxu0 0.0
    %770 = vmatprep.subr.mxu0 0.0
    %771 = vmatpush1.msra.mxu0 0.0
    %772 = vmatprep.subr.mxu0 0.0
    %773 = vmatpush1.msra.mxu0 0.0
    %774 = vmatprep.subr.mxu0 0.0
    %775 = vmatpush1.msra.mxu0 0.0
    %776 = vmatprep.mubr.f32.mxu0 0.0
    %777 = vmatmul.mubr.f32.gmra.mrb[0].mxu0 %v710
    %v778 = vpop.f32.mrb[0].mxu0
    %v779 = vadd.f32 %v708, %v778
    %v780 = vpop.f32.mrb[0].mxu0
    %781 = vdwg.mxu0
    %v782 = vmax.f32 %v779, 0.0
    %v783 = vld [vmem:[%s8] sm:$0xff]
    %v784 = vld [vmem:[%s8 + $0x8] sm:$0xff]
    %v785 = vld [vmem:[%s8 + $0x10] sm:$0xff]
    %v786 = vld [vmem:[%s8 + $0x18] sm:$0xff]
    %v787 = vld [vmem:[%s10 + $0x4] sm:$0x1]
    %v788 = vlaneseq
    %v789 = vshrl.u32 %v788, 7
    %v790 = vsub.s32 0, %v789
    %v791 = vrot.slane %v787, %v790
    %vm792 = vcmask 261120
    %v794 = vsel %vm792, %v782, 0
    %796 = vmatprep.subr.mxu0 0.0
    %797 = vmatpush1.msra.mxu0 %v783
    %798 = vmatprep.subr.mxu0 0.0
    %799 = vmatpush1.msra.mxu0 %v784
    %800 = vmatprep.subr.mxu0 0.0
    %801 = vmatpush1.msra.mxu0 %v785
    %802 = vmatprep.subr.mxu0 0.0
    %803 = vmatpush1.msra.mxu0 %v786
    %804 = vmatprep.subr.mxu0 0.0
    %805 = vmatpush1.msra.mxu0 0.0
    %806 = vmatprep.subr.mxu0 0.0
    %807 = vmatpush1.msra.mxu0 0.0
    %808 = vmatprep.subr.mxu0 0.0
    %809 = vmatpush1.msra.mxu0 0.0
    %810 = vmatprep.subr.mxu0 0.0
    %811 = vmatpush1.msra.mxu0 0.0
    %812 = vmatprep.subr.mxu0 0.0
    %813 = vmatpush1.msra.mxu0 0.0
    %814 = vmatprep.subr.mxu0 0.0
    %815 = vmatpush1.msra.mxu0 0.0
    %816 = vmatprep.subr.mxu0 0.0
    %817 = vmatpush1.msra.mxu0 0.0
    %818 = vmatprep.subr.mxu0 0.0
    %819 = vmatpush1.msra.mxu0 0.0
    %820 = vmatprep.subr.mxu0 0.0
    %821 = vmatpush1.msra.mxu0 0.0
    %822 = vmatprep.subr.mxu0 0.0
    %823 = vmatpush1.msra.mxu0 0.0
    %824 = vmatprep.subr.mxu0 0.0
    %825 = vmatpush1.msra.mxu0 0.0
    %826 = vmatprep.subr.mxu0 0.0
    %827 = vmatpush1.msra.mxu0 0.0
    %828 = vmatprep.subr.mxu0 0.0
    %829 = vmatpush1.msra.mxu0 0.0
    %830 = vmatprep.subr.mxu0 0.0
    %831 = vmatpush1.msra.mxu0 0.0
    %832 = vmatprep.subr.mxu0 0.0
    %833 = vmatpush1.msra.mxu0 0.0
    %834 = vmatprep.subr.mxu0 0.0
    %835 = vmatpush1.msra.mxu0 0.0
    %836 = vmatprep.subr.mxu0 0.0
    %837 = vmatpush1.msra.mxu0 0.0
    %838 = vmatprep.subr.mxu0 0.0
    %839 = vmatpush1.msra.mxu0 0.0
    %840 = vmatprep.subr.mxu0 0.0
    %841 = vmatpush1.msra.mxu0 0.0
    %842 = vmatprep.subr.mxu0 0.0
    %843 = vmatpush1.msra.mxu0 0.0
    %844 = vmatprep.subr.mxu0 0.0
    %845 = vmatpush1.msra.mxu0 0.0
    %846 = vmatprep.subr.mxu0 0.0
    %847 = vmatpush1.msra.mxu0 0.0
    %848 = vmatprep.subr.mxu0 0.0
    %849 = vmatpush1.msra.mxu0 0.0
    %850 = vmatprep.subr.mxu0 0.0
    %851 = vmatpush1.msra.mxu0 0.0
    %852 = vmatprep.subr.mxu0 0.0
    %853 = vmatpush1.msra.mxu0 0.0
    %854 = vmatprep.subr.mxu0 0.0
    %855 = vmatpush1.msra.mxu0 0.0
    %856 = vmatprep.subr.mxu0 0.0
    %857 = vmatpush1.msra.mxu0 0.0
    %858 = vmatprep.subr.mxu0 0.0
    %859 = vmatpush1.msra.mxu0 0.0
    %860 = vmatprep.mubr.f32.mxu0 0.0
    %861 = vmatmul.mubr.f32.gmra.mrb[0].mxu0 %v794
    %v862 = vpop.f32.mrb[0].mxu0
    %v863 = vadd.f32 %v791, %v862
    %v864 = vpop.f32.mrb[0].mxu0
    %865 = vdwg.mxu0
    %v866 = vmax.f32 %v863, 0.0
    %v867 = vld [vmem:[%s9] sm:$0xff]
    %v868 = vld [vmem:[%s9 + $0x8] sm:$0xff]
    %v869 = vld [vmem:[%s10 + $0x5] sm:$0x1]
    %v870 = vlaneseq
    %v871 = vshrl.u32 %v870, 7
    %v872 = vsub.s32 0, %v871
    %v873 = vrot.slane %v869, %v872
    %v875 = vsel %vm448, %v866, 0
    %877 = vmatprep.subr.mxu0 0.0
    %878 = vmatpush1.msra.mxu0 %v867
    %879 = vmatprep.subr.mxu0 0.0
    %880 = vmatpush1.msra.mxu0 %v868
    %881 = vmatprep.subr.mxu0 0.0
    %882 = vmatpush1.msra.mxu0 0.0
    %883 = vmatprep.subr.mxu0 0.0
    %884 = vmatpush1.msra.mxu0 0.0
    %885 = vmatprep.subr.mxu0 0.0
    %886 = vmatpush1.msra.mxu0 0.0
    %887 = vmatprep.subr.mxu0 0.0
    %888 = vmatpush1.msra.mxu0 0.0
    %889 = vmatprep.subr.mxu0 0.0
    %890 = vmatpush1.msra.mxu0 0.0
    %891 = vmatprep.subr.mxu0 0.0
    %892 = vmatpush1.msra.mxu0 0.0
    %893 = vmatprep.subr.mxu0 0.0
    %894 = vmatpush1.msra.mxu0 0.0
    %895 = vmatprep.subr.mxu0 0.0
    %896 = vmatpush1.msra.mxu0 0.0
    %897 = vmatprep.subr.mxu0 0.0
    %898 = vmatpush1.msra.mxu0 0.0
    %899 = vmatprep.subr.mxu0 0.0
    %900 = vmatpush1.msra.mxu0 0.0
    %901 = vmatprep.subr.mxu0 0.0
    %902 = vmatpush1.msra.mxu0 0.0
    %903 = vmatprep.subr.mxu0 0.0
    %904 = vmatpush1.msra.mxu0 0.0
    %905 = vmatprep.subr.mxu0 0.0
    %906 = vmatpush1.msra.mxu0 0.0
    %907 = vmatprep.subr.mxu0 0.0
    %908 = vmatpush1.msra.mxu0 0.0
    %909 = vmatprep.subr.mxu0 0.0
    %910 = vmatpush1.msra.mxu0 0.0
    %911 = vmatprep.subr.mxu0 0.0
    %912 = vmatpush1.msra.mxu0 0.0
    %913 = vmatprep.subr.mxu0 0.0
    %914 = vmatpush1.msra.mxu0 0.0
    %915 = vmatprep.subr.mxu0 0.0
    %916 = vmatpush1.msra.mxu0 0.0
    %917 = vmatprep.subr.mxu0 0.0
    %918 = vmatpush1.msra.mxu0 0.0
    %919 = vmatprep.subr.mxu0 0.0
    %920 = vmatpush1.msra.mxu0 0.0
    %921 = vmatprep.subr.mxu0 0.0
    %922 = vmatpush1.msra.mxu0 0.0
    %923 = vmatprep.subr.mxu0 0.0
    %924 = vmatpush1.msra.mxu0 0.0
    %925 = vmatprep.subr.mxu0 0.0
    %926 = vmatpush1.msra.mxu0 0.0
    %927 = vmatprep.subr.mxu0 0.0
    %928 = vmatpush1.msra.mxu0 0.0
    %929 = vmatprep.subr.mxu0 0.0
    %930 = vmatpush1.msra.mxu0 0.0
    %931 = vmatprep.subr.mxu0 0.0
    %932 = vmatpush1.msra.mxu0 0.0
    %933 = vmatprep.subr.mxu0 0.0
    %934 = vmatpush1.msra.mxu0 0.0
    %935 = vmatprep.subr.mxu0 0.0
    %936 = vmatpush1.msra.mxu0 0.0
    %937 = vmatprep.subr.mxu0 0.0
    %938 = vmatpush1.msra.mxu0 0.0
    %939 = vmatprep.subr.mxu0 0.0
    %940 = vmatpush1.msra.mxu0 0.0
    %941 = vmatprep.mubr.f32.mxu0 0.0
    %942 = vmatmul.mubr.f32.gmra.mrb[0].mxu0 %v875
    %v943 = vpop.f32.mrb[0].mxu0
    %v944 = vadd.f32 %v873, %v943
    %v945 = vpop.f32.mrb[0].mxu0
    %946 = vdwg.mxu0
    %v947 = vlaneseq
    %v948 = vshrl.u32 %v947, 7
    %vm949 = vcmp.ge.s32.totalorder %v948, 0
    %vm950 = vcmp.lt.s32.totalorder %v948, 4
    %vm951 = vmand %vm949, %vm950
    %v952 = vsel %vm951, %v944, 0.0
    %vm953 = vcmask 64512
    %v954 = vsel %vm953, %v952, 0.0
    %v955 = vrot.slane %v954, 4
    %v956 = vadd.f32 %v954, %v955
    %v957 = vrot.slane %v956, 2
    %v958 = vadd.f32 %v956, %v957
    %v959 = vrot.slane %v958, 1
    %v960 = vadd.f32 %v958, %v959
    %v961 = vmul.f32 %v960, 0.25
    %vm962 = vcmask 57344
    %963 = vst.msk [vmem:[#allocation2] sm:$0x1] %vm962, %v961
    %vm964 = vcmp.ge.s32.totalorder %v948, 4
    %vm965 = vcmp.lt.s32.totalorder %v948, 8
    %vm966 = vmand %vm964, %vm965
    %v967 = vsel %vm966, %v944, 0.0
    %v968 = vsel %vm953, %v967, 0.0
    %v969 = vrot.slane %v968, 4
    %v970 = vadd.f32 %v968, %v969
    %v971 = vrot.slane %v970, 2
    %v972 = vadd.f32 %v970, %v971
    %v973 = vrot.slane %v972, 1
    %v974 = vadd.f32 %v972, %v973
    %v975 = vmul.f32 %v974, 0.25
    %976 = vst.msk [vmem:[#allocation2 + $0x1] sm:$0x1] %vm962, %v975
    // Predicated region
    $region46: #{_forward.1} parent=1 // pred_check
      _
    $region47: #{_forward.1} parent=1 // pred_check_branch
      %978 = sbr.rel (0) target = $region49
    $region48: #{_forward.1} parent=1 // pred_region
      %s980 = ssub.s32 32, 32
      %981 = vsyncadd [#allocation3], %s980
      %s983 = sshll.u32 [#allocation2], 4
      %s984 = int_to_ptr.vmem [resolvable:$true] %s983
      %986 = dma.vmem_to_hbm [thread:$0]  %s984, 32, %s11, [#allocation3]
    $region49: #{_forward.1} parent=1 // pred_fallthru
      _
    // Predicated region
    $region50: #{_forward.1} parent=1 // pred_check
      _
    $region51: #{_forward.1} parent=1 // pred_check_branch
      %988 = sbr.rel (0) target = $region53
    $region52: #{_forward.1} parent=1 // pred_region
      %989 = dma.done [#allocation3], 32
    $region53: #{_forward.1} parent=1 // pred_fallthru
      _
    %990 = vsyncpa [#allocation3], 1

</llo_original>
